<compile_context>
chip_gen: v5e
topology: v5e:2x2
jax: 0.10.0
libtpu: 0.0.40
codegen_flags: <defaults>
</compile_context>

<pallas_src>
import jax
import jax.numpy as jnp
import numpy as np
from jax.experimental import pallas as pl
from jax.experimental.pallas import tpu as pltpu


def _round_up(x: int, m: int) -> int:
    return ((x + m - 1) // m) * m


def _cdiv(a: int, b: int) -> int:
    return (a + b - 1) // b


def _make_soft_ce_call(n_rows: int, n_cls: int, row_tile: int, n_par: int,
                       blocks_per_par: int, total_blocks: int,
                       use_ignore: bool, vmem_limit: int):
    """Builds the pallas_call for fixed (n_rows, n_cls) and tiling params."""
    assert row_tile % 8 == 0
    c_pad = _round_up(n_cls, 128)

    def kernel(pred_ref, tgt_ref, loss_ref, cnt_ref):
        p = pl.program_id(0)          # parallel (TensorCore) axis
        j = pl.program_id(1)          # row-block reduction axis

        @pl.when(j == 0)
        def _init():
            loss_ref[...] = jnp.zeros_like(loss_ref)
            cnt_ref[...] = jnp.zeros_like(cnt_ref)

        pred = pred_ref[...].astype(jnp.float32)      # (RT, C)
        tgt = tgt_ref[...].astype(jnp.float32)        # (RT, C)

        # --- row validity -------------------------------------------------
        tgt_sum = jnp.sum(tgt, axis=-1, keepdims=True)            # (RT, 1)
        valid = jnp.logical_not(jnp.isnan(tgt_sum))                # NaN-row filter
        if use_ignore:
            valid = jnp.logical_and(valid, tgt[:, 0:1] != -1.0)    # ignore filter
        # ragged-tail mask: index-based (tail rows may contain arbitrary
        # garbage from the overhanging block, never trust their data).
        blk = p * blocks_per_par + j
        row0 = blk * row_tile
        rows = jax.lax.broadcasted_iota(jnp.int32, (row_tile, 1), 0) + row0
        valid = jnp.logical_and(valid, rows < n_rows)

        # --- log-softmax pieces (logp is never materialized) ---------------
        m = jnp.max(pred, axis=-1, keepdims=True)                  # (RT, 1)
        lse = jnp.log(jnp.sum(jnp.exp(pred - m), axis=-1, keepdims=True))
        shift = lse + m                                            # -logp = shift - pred

        # use jnp.where (not multiply-by-mask) so NaNs in dropped rows cannot
        # leak into the sums.
        loss_e = jnp.where(valid, tgt * (shift - pred), 0.0)       # (RT, C)
        cnt_e = jnp.where(valid, 1.0, 0.0)                         # (RT, 1)

        # --- accumulate lane/sublane partials with VPU adds only -----------
        grp = row_tile // 8
        loss_p = jnp.sum(loss_e.reshape(grp, 8, n_cls), axis=0)    # (8, C)
        cnt_p = jnp.sum(cnt_e.reshape(grp, 8, 1), axis=0)          # (8, 1)

        loss_ref[0, :, 0:n_cls] += loss_p
        cnt_ref[0, :, 0:1] += cnt_p

    def in_index_map(p, j):
        blk = p * blocks_per_par + j
        # clamp so grid cells past the last real block re-read an in-bounds
        # block (their contribution is zeroed by the row-index mask).
        return (jnp.minimum(blk, total_blocks - 1), 0)

    return pl.pallas_call(
        kernel,
        out_shape=(
            jax.ShapeDtypeStruct((n_par, 8, c_pad), jnp.float32),  # loss partials
            jax.ShapeDtypeStruct((n_par, 8, 128), jnp.float32),    # count partials
        ),
        grid=(n_par, blocks_per_par),
        in_specs=[
            pl.BlockSpec((row_tile, n_cls), in_index_map),          # pred tile
            pl.BlockSpec((row_tile, n_cls), in_index_map),          # target tile
        ],
        out_specs=(
            pl.BlockSpec((1, 8, c_pad), lambda p, j: (p, 0, 0)),
            pl.BlockSpec((1, 8, 128), lambda p, j: (p, 0, 0)),
        ),
        compiler_params=pltpu.CompilerParams(
            dimension_semantics=("parallel", "arbitrary"),
            vmem_limit_bytes=vmem_limit,
        ),
    )


def soft_ce_loss(pred, target, ignore_index=None, *, row_tile=None):
    """JAX/Pallas equivalent of SoftCELoss.forward (dim=-1). Returns scalar f32."""
    b, h, w, c = target.shape
    n = b * h * w
    pred2 = pred.reshape(n, c)
    tgt2 = target.reshape(n, c)

    c_pad = _round_up(c, 128)
    if row_tile is None:
        # ~2 MiB (lane-padded f32) per input block: step overhead is hidden
        # behind the DMA while buffers + temporaries fit v7x's 64 MiB VMEM.
        row_tile = (2 << 20) // (c_pad * 4)
    row_tile = max(8, (row_tile // 8) * 8)
    row_tile = min(row_tile, max(8, _round_up(n, 8)))   # no point exceeding N

    total_blocks = _cdiv(n, row_tile)
    n_par = 2 if total_blocks >= 2 else 1                # shard across v7x's 2 TCs
    blocks_per_par = _cdiv(total_blocks, n_par)

    # VMEM budget: 2 inputs x 2 pipeline buffers + ~6 elementwise temporaries
    # of one (lane-padded) block each, plus slack.  Capped well under v7x's
    # 64 MiB physical VMEM.
    block_bytes = row_tile * c_pad * 4
    vmem_limit = 4 * block_bytes + 6 * block_bytes + (4 << 20)
    vmem_limit = int(min(max(vmem_limit, 16 << 20), 40 << 20))

    call = _make_soft_ce_call(n, c, row_tile, n_par, blocks_per_par,
                              total_blocks, bool(ignore_index), vmem_limit)
    loss_part, cnt_part = call(pred2, tgt2)
    # NOTE: if no row is valid this is sum/0 -> NaN, matching the reference.
    # TODO(synk): the original module's host-side debug `if loss > 100: print(loss)`
    # is intentionally not replicated inside the kernel.
    return jnp.sum(loss_part) / jnp.sum(cnt_part)


def soft_ce_loss_ref(pred, target, ignore_index=None):
    """Pure-JAX reference mirroring the PyTorch forward exactly."""
    b, h, w, c = target.shape
    pred = pred.reshape(b * h * w, c)
    target = target.reshape(b * h * w, c)
    valid = jnp.logical_not(jnp.isnan(jnp.sum(target, axis=-1)))
    if ignore_index:
        valid = jnp.logical_and(valid, target[:, 0] != -1)
    logp = jax.nn.log_softmax(pred, axis=-1)
    row = jnp.sum(-target * logp, axis=-1)
    row = jnp.where(valid, row, 0.0)
    cnt = jnp.sum(valid.astype(jnp.float32))
    return jnp.sum(row) / cnt


if __name__ == "__main__":
    key = jax.random.PRNGKey(0)
    k1, k2, k3, k4 = jax.random.split(key, 4)

    # Test 1: small shapes, NaN-row filter only (single block, single core).
    b, h, w, c = 2, 8, 8, 32      # N = 128 rows, 32 classes
    pred = jax.random.normal(k1, (b, h, w, c), dtype=jnp.float32)
    target = jax.nn.softmax(
        jax.random.normal(k2, (b, h, w, c), dtype=jnp.float32), axis=-1)
    target = target.at[0, 0, 0, :].set(jnp.nan)     # exercise the NaN-row filter

    out = jax.block_until_ready(soft_ce_loss(pred, target, ignore_index=None))
    ref = soft_ce_loss_ref(pred, target, ignore_index=None)
    assert np.allclose(np.asarray(out), np.asarray(ref), rtol=1e-5, atol=1e-5), (out, ref)

    # Test 2: ragged N (not a multiple of the row tile), multi-block grid with
    # the 2-way parallel axis (one fully out-of-range grid cell), NaN rows and
    # ignore_index rows.
    b2, h2, w2, c2 = 2, 7, 9, 32  # N = 126 rows
    pred_b = jax.random.normal(k3, (b2, h2, w2, c2), dtype=jnp.float32)
    target_b = jax.nn.softmax(
        jax.random.normal(k4, (b2, h2, w2, c2), dtype=jnp.float32), axis=-1)
    target_b = target_b.at[0, 1, 2, :].set(jnp.nan)
    target_b = target_b.at[1, 3, 4, 0].set(-1.0)
    target_b = target_b.at[0, 5, 0, 0].set(-1.0)

    out2 = jax.block_until_ready(
        soft_ce_loss(pred_b, target_b, ignore_index=255, row_tile=48))
    ref2 = soft_ce_loss_ref(pred_b, target_b, ignore_index=255)
    assert np.allclose(np.asarray(out2), np.asarray(ref2), rtol=1e-5, atol=1e-5), (out2, ref2)

    print("KERNEL_OK")
</pallas_src>

<mosaic_0001>
module attributes {stable_mosaic.version = 11 : i64} {
  func.func @kernel(%arg0: i32, %arg1: i32, %arg2: memref<128x32xf32, #tpu.memory_space<vmem>>, %arg3: memref<128x32xf32, #tpu.memory_space<vmem>>, %arg4: memref<1x8x128xf32, #tpu.memory_space<vmem>>, %arg5: memref<1x8x128xf32, #tpu.memory_space<vmem>>) attributes {dimension_semantics = [#tpu.dimension_semantics<parallel>, #tpu.dimension_semantics<arbitrary>], iteration_bounds = array<i64: 1, 1>, scalar_prefetch = 0 : i64, scratch_operands = 0 : i64, tpu.core_type = #tpu.core_type<tc>, window_params = [{transform_indices = @transform_0, window_bounds = array<i64: 128, 32>}, {transform_indices = @transform_1, window_bounds = array<i64: 128, 32>}, {transform_indices = @transform_2, window_bounds = array<i64: 1, 8, 128>}, {transform_indices = @transform_3, window_bounds = array<i64: 1, 8, 128>}]} {
    %c0_i32 = arith.constant 0 : i32
    %0 = arith.cmpi eq, %arg1, %c0_i32 : i32
    %1 = arith.extui %0 : i1 to i32
    %c0_i32_0 = arith.constant 0 : i32
    %2 = arith.cmpi ne, %1, %c0_i32_0 : i32
    scf.if %2 {
      %cst_25 = arith.constant 0.000000e+00 : f32
      %53 = vector.broadcast %cst_25 : f32 to vector<1x8x128xf32>
      %c0_26 = arith.constant 0 : index
      %c0_27 = arith.constant 0 : index
      %c0_28 = arith.constant 0 : index
      %54 = vector.load %arg4[%c0_26, %c0_27, %c0_28] : memref<1x8x128xf32, #tpu.memory_space<vmem>>, vector<1x8x128xf32>
      tpu.vector_store %arg4[%c0_26, %c0_27, %c0_28], %53 {strides = array<i32>} : memref<1x8x128xf32, #tpu.memory_space<vmem>>, vector<1x8x128xf32>,
      %cst_29 = arith.constant 0.000000e+00 : f32
      %55 = vector.broadcast %cst_29 : f32 to vector<1x8x128xf32>
      %c0_30 = arith.constant 0 : index
      %c0_31 = arith.constant 0 : index
      %c0_32 = arith.constant 0 : index
      %56 = vector.load %arg5[%c0_30, %c0_31, %c0_32] : memref<1x8x128xf32, #tpu.memory_space<vmem>>, vector<1x8x128xf32>
      tpu.vector_store %arg5[%c0_30, %c0_31, %c0_32], %55 {strides = array<i32>} : memref<1x8x128xf32, #tpu.memory_space<vmem>>, vector<1x8x128xf32>,
    } else {
    }
    %c0 = arith.constant 0 : index
    %c0_1 = arith.constant 0 : index
    %3 = vector.load %arg2[%c0, %c0_1] : memref<128x32xf32, #tpu.memory_space<vmem>>, vector<128x32xf32>
    %c0_2 = arith.constant 0 : index
    %c0_3 = arith.constant 0 : index
    %4 = vector.load %arg3[%c0_2, %c0_3] : memref<128x32xf32, #tpu.memory_space<vmem>>, vector<128x32xf32>
    %cst = arith.constant dense<0.000000e+00> : vector<128xf32>
    %5 = vector.multi_reduction <add>, %4, %cst [1] : vector<128x32xf32> to vector<128xf32>
    %6 = vector.shape_cast %5 : vector<128xf32> to vector<128x1xf32>
    %7 = arith.cmpf one, %6, %6 : vector<128x1xf32>
    %cst_4 = arith.constant dense<true> : vector<128x1xi1>
    %8 = arith.xori %7, %cst_4 : vector<128x1xi1>
    %c1_i32 = arith.constant 1 : i32
    %9 = arith.muli %arg0, %c1_i32 : i32
    %10 = arith.addi %9, %arg1 : i32
    %c128_i32 = arith.constant 128 : i32
    %11 = arith.muli %10, %c128_i32 : i32
    %12 = tpu.iota {dimensions = array<i32: 0>} : vector<128x1xi32>
    %13 = vector.broadcast %11 : i32 to vector<128x1xi32>
    %14 = arith.addi %12, %13 : vector<128x1xi32>
    %c128_i32_5 = arith.constant 128 : i32
    %15 = vector.broadcast %c128_i32_5 : i32 to vector<128x1xi32>
    %16 = arith.cmpi slt, %14, %15 : vector<128x1xi32>
    %17 = arith.andi %8, %16 : vector<128x1xi1>
    %cst_6 = arith.constant dense<0xFF800000> : vector<128xf32>
    %18 = vector.multi_reduction <maximumf>, %3, %cst_6 [1] : vector<128x32xf32> to vector<128xf32>
    %19 = vector.shape_cast %18 : vector<128xf32> to vector<128x1xf32>
    %20 = vector.broadcast %19 : vector<128x1xf32> to vector<128x32xf32>
    %21 = arith.subf %3, %20 : vector<128x32xf32>
    %22 = math.exp %21 : vector<128x32xf32>
    %cst_7 = arith.constant dense<0.000000e+00> : vector<128xf32>
    %23 = vector.multi_reduction <add>, %22, %cst_7 [1] : vector<128x32xf32> to vector<128xf32>
    %24 = vector.shape_cast %23 : vector<128xf32> to vector<128x1xf32>
    %25 = math.log %24 : vector<128x1xf32>
    %26 = arith.addf %25, %19 : vector<128x1xf32>
    %27 = vector.broadcast %26 : vector<128x1xf32> to vector<128x32xf32>
    %28 = arith.subf %27, %3 : vector<128x32xf32>
    %29 = arith.mulf %4, %28 : vector<128x32xf32>
    %cst_8 = arith.constant 0.000000e+00 : f32
    %30 = vector.shape_cast %17 : vector<128x1xi1> to vector<128x1xi1>
    %31 = vector.broadcast %30 : vector<128x1xi1> to vector<128x32xi1>
    %32 = vector.broadcast %cst_8 : f32 to vector<128x32xf32>
    %33 = arith.select %31, %29, %32 : vector<128x32xi1>, vector<128x32xf32>
    %cst_9 = arith.constant 1.000000e+00 : f32
    %cst_10 = arith.constant 0.000000e+00 : f32
    %34 = vector.broadcast %cst_9 : f32 to vector<128x1xf32>
    %35 = vector.broadcast %cst_10 : f32 to vector<128x1xf32>
    %36 = arith.select %17, %34, %35 : vector<128x1xi1>, vector<128x1xf32>
    %37 = vector.shape_cast %33 : vector<128x32xf32> to vector<16x8x32xf32>
    %cst_11 = arith.constant dense<0.000000e+00> : vector<8x32xf32>
    %38 = vector.multi_reduction <add>, %37, %cst_11 [0] : vector<16x8x32xf32> to vector<8x32xf32>
    %39 = vector.shape_cast %36 : vector<128x1xf32> to vector<16x8x1xf32>
    %cst_12 = arith.constant dense<0.000000e+00> : vector<8x1xf32>
    %40 = vector.multi_reduction <add>, %39, %cst_12 [0] : vector<16x8x1xf32> to vector<8x1xf32>
    %c0_13 = arith.constant 0 : index
    %c0_14 = arith.constant 0 : index
    %c0_15 = arith.constant 0 : index
    %41 = vector.load %arg4[%c0_13, %c0_14, %c0_15] : memref<1x8x128xf32, #tpu.memory_space<vmem>>, vector<1x8x32xf32>
    %42 = vector.shape_cast %41 : vector<1x8x32xf32> to vector<8x32xf32>
    %43 = arith.addf %42, %38 : vector<8x32xf32>
    %c0_16 = arith.constant 0 : index
    %c0_17 = arith.constant 0 : index
    %c0_18 = arith.constant 0 : index
    %44 = vector.load %arg4[%c0_16, %c0_17, %c0_18] : memref<1x8x128xf32, #tpu.memory_space<vmem>>, vector<1x8x32xf32>
    %45 = vector.shape_cast %44 : vector<1x8x32xf32> to vector<8x32xf32>
    %46 = vector.shape_cast %43 : vector<8x32xf32> to vector<1x8x32xf32>
    tpu.vector_store %arg4[%c0_16, %c0_17, %c0_18], %46 {strides = array<i32>} : memref<1x8x128xf32, #tpu.memory_space<vmem>>, vector<1x8x32xf32>,
    %c0_19 = arith.constant 0 : index
    %c0_20 = arith.constant 0 : index
    %c0_21 = arith.constant 0 : index
    %47 = vector.load %arg5[%c0_19, %c0_20, %c0_21] : memref<1x8x128xf32, #tpu.memory_space<vmem>>, vector<1x8x1xf32>
    %48 = vector.shape_cast %47 : vector<1x8x1xf32> to vector<8x1xf32>
    %49 = arith.addf %48, %40 : vector<8x1xf32>
    %c0_22 = arith.constant 0 : index
    %c0_23 = arith.constant 0 : index
    %c0_24 = arith.constant 0 : index
    %50 = vector.load %arg5[%c0_22, %c0_23, %c0_24] : memref<1x8x128xf32, #tpu.memory_space<vmem>>, vector<1x8x1xf32>
    %51 = vector.shape_cast %50 : vector<1x8x1xf32> to vector<8x1xf32>
    %52 = vector.shape_cast %49 : vector<8x1xf32> to vector<1x8x1xf32>
    tpu.vector_store %arg5[%c0_22, %c0_23, %c0_24], %52 {strides = array<i32>} : memref<1x8x128xf32, #tpu.memory_space<vmem>>, vector<1x8x1xf32>,
    return
  }
  func.func @transform_0(%arg0: i32, %arg1: i32) -> (i32, i32) {
    %c1_i32 = arith.constant 1 : i32
    %0 = arith.muli %arg0, %c1_i32 : i32
    %1 = arith.addi %0, %arg1 : i32
    %c0_i32 = arith.constant 0 : i32
    %2 = arith.minsi %1, %c0_i32 : i32
    %c0_i32_0 = arith.constant 0 : i32
    %c0_i32_1 = arith.constant 0 : i32
    return %2, %c0_i32_0 : i32, i32
  }
  func.func @transform_1(%arg0: i32, %arg1: i32) -> (i32, i32) {
    %c1_i32 = arith.constant 1 : i32
    %0 = arith.muli %arg0, %c1_i32 : i32
    %1 = arith.addi %0, %arg1 : i32
    %c0_i32 = arith.constant 0 : i32
    %2 = arith.minsi %1, %c0_i32 : i32
    %c0_i32_0 = arith.constant 0 : i32
    %c0_i32_1 = arith.constant 0 : i32
    return %2, %c0_i32_0 : i32, i32
  }
  func.func @transform_2(%arg0: i32, %arg1: i32) -> (i32, i32, i32) {
    %c0_i32 = arith.constant 0 : i32
    %c0_i32_0 = arith.constant 0 : i32
    %c0_i32_1 = arith.constant 0 : i32
    return %arg0, %c0_i32, %c0_i32_0 : i32, i32, i32
  }
  func.func @transform_3(%arg0: i32, %arg1: i32) -> (i32, i32, i32) {
    %c0_i32 = arith.constant 0 : i32
    %c0_i32_0 = arith.constant 0 : i32
    %c0_i32_1 = arith.constant 0 : i32
    return %arg0, %c0_i32, %c0_i32_0 : i32, i32, i32
  }
}

</mosaic_0001>

<llo_original>
// kernel: tpu_custom_call.1
$region0: #{tpu_custom_call.1}
  #allocation0 [shape = 'u32[]', space=smem, size = 0x4, offset = 0x4, fixed_abs, tag = 'smem constant byte address 0x4 - core index']
  #allocation1 [shape = 'u32[72,128]{1,0:T(1,128)}', space=vmem, size = 0x9000, scoped, tag = 'internal scratch']
  %s0 = inlined_call_operand.vmem [shape: f32[128,32], index: 0, kind: input, shape index: {}]
  %s1 = inlined_call_operand.vmem [shape: f32[128,32], index: 1, kind: input, shape index: {}]
  %s2 = inlined_call_operand.hbm [shape: f32[1,8,128], index: 2, kind: output, shape index: {0}]
  %s3 = inlined_call_operand.hbm [shape: f32[1,8,128], index: 3, kind: output, shape index: {1}]
  %4 = xla_tuple %s2, %s3
  %s5 = sld [smem:[#allocation0]]
  $region30: #{tpu_custom_call.1} parent=0
    _
  %s7 = ssub.s32 1, %s5
  %s8 = scalar_select 0, %s7, %s5
  $region1: #{tpu_custom_call.1} parent=0
    #allocation2 [shape = 'u8[4096]{0}', space=vmem, size = 0x1000, scoped, tag = 'output window, operand 0, single buffered']
    #allocation3 [shape = 's32[1]{0}', space=sflag, size = 0x4, scoped, tag = 'scoped memory for tpu_custom_call.1']
    #allocation4 [shape = 'u8[4096]{0}', space=vmem, size = 0x1000, scoped, tag = 'output window, operand 1, single buffered']
    #allocation5 [shape = 's32[1]{0}', space=sflag, size = 0x4, scoped, tag = 'scoped memory for tpu_custom_call.1']
    %9 = vsyncpa [#allocation3], 0
    %10 = vsyncpa [#allocation5], 0
    // Predicated region
    $region2: #{tpu_custom_call.1} parent=1 // pred_check
      _
    $region3: #{tpu_custom_call.1} parent=1 // pred_check_branch
      %12 = sbr.rel (0) target = $region5
    $region4: #{tpu_custom_call.1} parent=1 // pred_region
      %s13 = sadd.s32 0, 0
      %p14 = scmp.lt.s32.totalorder %s13, 0
      %s15 = scalar_select %p14, %s13, 0
      %s16 = smul.u32 16, %s15
      %p17 = scmp.lt.s32.totalorder %s16, 15
      %s18 = scalar_select %p17, %s16, 15
      %s19 = smul.addr %s18, 8
      %s20 = scalar_lea.vmem %s0, %s19
      %s21 = sadd.s32 0, 0
      %p22 = scmp.lt.s32.totalorder %s21, 0
      %s23 = scalar_select %p22, %s21, 0
      %s24 = smul.u32 16, %s23
    $region5: #{tpu_custom_call.1} parent=1 // pred_fallthru
      _
    // Predicated region
    $region6: #{tpu_custom_call.1} parent=1 // pred_check
      _
    $region7: #{tpu_custom_call.1} parent=1 // pred_check_branch
      %26 = sbr.rel (0) target = $region9
    $region8: #{tpu_custom_call.1} parent=1 // pred_region
      %s27 = sadd.s32 0, 0
      %p28 = scmp.lt.s32.totalorder %s27, 0
      %s29 = scalar_select %p28, %s27, 0
      %s30 = smul.u32 16, %s29
      %p31 = scmp.lt.s32.totalorder %s30, 15
      %s32 = scalar_select %p31, %s30, 15
      %s33 = smul.addr %s32, 8
      %s34 = scalar_lea.vmem %s1, %s33
      %s35 = sadd.s32 0, 0
      %p36 = scmp.lt.s32.totalorder %s35, 0
      %s37 = scalar_select %p36, %s35, 0
      %s38 = smul.u32 16, %s37
    $region9: #{tpu_custom_call.1} parent=1 // pred_fallthru
      _
    %s39 = sadd.s32 0, 0
    %p40 = scmp.lt.s32.totalorder %s39, 0
    %s41 = scalar_select %p40, %s39, 0
    %s42 = smul.u32 16, %s41
    %p43 = scmp.lt.s32.totalorder %s42, 15
    %s44 = scalar_select %p43, %s42, 15
    %s45 = smul.addr %s44, 8
    %s46 = scalar_lea.vmem %s0, %s45
    %s47 = sadd.s32 0, 0
    %p48 = scmp.lt.s32.totalorder %s47, 0
    %s49 = scalar_select %p48, %s47, 0
    %s50 = smul.u32 16, %s49
    %p51 = scmp.lt.s32.totalorder %s50, 15
    %s52 = scalar_select %p51, %s50, 15
    %s53 = smul.addr %s52, 8
    %s54 = scalar_lea.vmem %s1, %s53
    %s55 = sadd.s32 0, 0
    %p56 = scmp.lt.s32.totalorder %s55, 0
    %s57 = scalar_select %p56, %s55, 0
    %s58 = smul.u32 16, %s57
    %p59 = scmp.lt.s32.totalorder %s58, 15
    %s60 = scalar_select %p59, %s58, 15
    %s61 = smul.addr %s60, 8
    %s62 = scalar_lea.vmem %s0, %s61
    %s63 = sadd.s32 0, 0
    %p64 = scmp.lt.s32.totalorder %s63, 0
    %s65 = scalar_select %p64, %s63, 0
    %s66 = smul.u32 16, %s65
    %s67 = sadd.s32 0, 0
    %p68 = scmp.lt.s32.totalorder %s67, 0
    %s69 = scalar_select %p68, %s67, 0
    %s70 = smul.u32 16, %s69
    %p71 = scmp.lt.s32.totalorder %s70, 15
    %s72 = scalar_select %p71, %s70, 15
    %s73 = smul.addr %s72, 8
    %s74 = scalar_lea.vmem %s1, %s73
    %s75 = sadd.s32 0, 0
    %p76 = scmp.lt.s32.totalorder %s75, 0
    %s77 = scalar_select %p76, %s75, 0
    %s78 = smul.u32 16, %s77
    %p79 = scmp.eq.s32.totalorder 0, 0
    // Predicated region
    $region10: #{tpu_custom_call.1} parent=1 // pred_check
      %p80 = pneg %p79
    $region11: #{tpu_custom_call.1} parent=1 // pred_check_branch
      %82 = sbr.rel (%p80) target = $region13
    $region12: #{tpu_custom_call.1} parent=1 // pred_region
      %83 = vst [vmem:[#allocation2] sm:$0xff] 0.0
      %84 = vst [vmem:[#allocation4] sm:$0xff] 0.0
    $region13: #{tpu_custom_call.1} parent=1 // pred_fallthru
      _
    %v85 = vld [vmem:[%s62] sm:$0xff]
    %v86 = vld [vmem:[%s62 + $0x8] sm:$0xff]
    %v87 = vld [vmem:[%s62 + $0x10] sm:$0xff]
    %v88 = vld [vmem:[%s62 + $0x18] sm:$0xff]
    %v89 = vld [vmem:[%s62 + $0x20] sm:$0xff]
    %v90 = vld [vmem:[%s62 + $0x28] sm:$0xff]
    %v91 = vld [vmem:[%s62 + $0x30] sm:$0xff]
    %v92 = vld [vmem:[%s62 + $0x38] sm:$0xff]
    %v93 = vld [vmem:[%s62 + $0x40] sm:$0xff]
    %v94 = vld [vmem:[%s62 + $0x48] sm:$0xff]
    %v95 = vld [vmem:[%s62 + $0x50] sm:$0xff]
    %v96 = vld [vmem:[%s62 + $0x58] sm:$0xff]
    %v97 = vld [vmem:[%s62 + $0x60] sm:$0xff]
    %v98 = vld [vmem:[%s62 + $0x68] sm:$0xff]
    %v99 = vld [vmem:[%s62 + $0x70] sm:$0xff]
    %v100 = vld [vmem:[%s62 + $0x78] sm:$0xff]
    %v101 = vld [vmem:[%s74] sm:$0xff]
    %v102 = vld [vmem:[%s74 + $0x8] sm:$0xff]
    %v103 = vld [vmem:[%s74 + $0x10] sm:$0xff]
    %v104 = vld [vmem:[%s74 + $0x18] sm:$0xff]
    %v105 = vld [vmem:[%s74 + $0x20] sm:$0xff]
    %v106 = vld [vmem:[%s74 + $0x28] sm:$0xff]
    %v107 = vld [vmem:[%s74 + $0x30] sm:$0xff]
    %v108 = vld [vmem:[%s74 + $0x38] sm:$0xff]
    %v109 = vld [vmem:[%s74 + $0x40] sm:$0xff]
    %v110 = vld [vmem:[%s74 + $0x48] sm:$0xff]
    %v111 = vld [vmem:[%s74 + $0x50] sm:$0xff]
    %v112 = vld [vmem:[%s74 + $0x58] sm:$0xff]
    %v113 = vld [vmem:[%s74 + $0x60] sm:$0xff]
    %v114 = vld [vmem:[%s74 + $0x68] sm:$0xff]
    %v115 = vld [vmem:[%s74 + $0x70] sm:$0xff]
    %v116 = vld [vmem:[%s74 + $0x78] sm:$0xff]
    %vm117 = vcmask 261120
    %v118 = vsel %vm117, %v101, 0.0
    %119 = vadd.xlane.f32.xlu0 %v118
    %v120 = vpop.xlane.xlu0 %119
    %v121 = vsel %vm117, %v102, 0.0
    %122 = vadd.xlane.f32.xlu0 %v121
    %v123 = vpop.xlane.xlu0 %122
    %v124 = vsel %vm117, %v103, 0.0
    %125 = vadd.xlane.f32.xlu0 %v124
    %v126 = vpop.xlane.xlu0 %125
    %v127 = vsel %vm117, %v104, 0.0
    %128 = vadd.xlane.f32.xlu0 %v127
    %v129 = vpop.xlane.xlu0 %128
    %v130 = vsel %vm117, %v105, 0.0
    %131 = vadd.xlane.f32.xlu0 %v130
    %v132 = vpop.xlane.xlu0 %131
    %v133 = vsel %vm117, %v106, 0.0
    %134 = vadd.xlane.f32.xlu0 %v133
    %v135 = vpop.xlane.xlu0 %134
    %v136 = vsel %vm117, %v107, 0.0
    %137 = vadd.xlane.f32.xlu0 %v136
    %v138 = vpop.xlane.xlu0 %137
    %v139 = vsel %vm117, %v108, 0.0
    %140 = vadd.xlane.f32.xlu0 %v139
    %v141 = vpop.xlane.xlu0 %140
    %v142 = vsel %vm117, %v109, 0.0
    %143 = vadd.xlane.f32.xlu0 %v142
    %v144 = vpop.xlane.xlu0 %143
    %v145 = vsel %vm117, %v110, 0.0
    %146 = vadd.xlane.f32.xlu0 %v145
    %v147 = vpop.xlane.xlu0 %146
    %v148 = vsel %vm117, %v111, 0.0
    %149 = vadd.xlane.f32.xlu0 %v148
    %v150 = vpop.xlane.xlu0 %149
    %v151 = vsel %vm117, %v112, 0.0
    %152 = vadd.xlane.f32.xlu0 %v151
    %v153 = vpop.xlane.xlu0 %152
    %v154 = vsel %vm117, %v113, 0.0
    %155 = vadd.xlane.f32.xlu0 %v154
    %v156 = vpop.xlane.xlu0 %155
    %v157 = vsel %vm117, %v114, 0.0
    %158 = vadd.xlane.f32.xlu0 %v157
    %v159 = vpop.xlane.xlu0 %158
    %v160 = vsel %vm117, %v115, 0.0
    %161 = vadd.xlane.f32.xlu0 %v160
    %v162 = vpop.xlane.xlu0 %161
    %v163 = vsel %vm117, %v116, 0.0
    %164 = vadd.xlane.f32.xlu0 %v163
    %v165 = vpop.xlane.xlu0 %164
    %vm166 = vcmp.ne.f32.partialorder %v120, %v120
    %vm167 = vcmp.ne.f32.partialorder %v123, %v123
    %vm168 = vcmp.ne.f32.partialorder %v126, %v126
    %vm169 = vcmp.ne.f32.partialorder %v129, %v129
    %vm170 = vcmp.ne.f32.partialorder %v132, %v132
    %vm171 = vcmp.ne.f32.partialorder %v135, %v135
    %vm172 = vcmp.ne.f32.partialorder %v138, %v138
    %vm173 = vcmp.ne.f32.partialorder %v141, %v141
    %vm174 = vcmp.ne.f32.partialorder %v144, %v144
    %vm175 = vcmp.ne.f32.partialorder %v147, %v147
    %vm176 = vcmp.ne.f32.partialorder %v150, %v150
    %vm177 = vcmp.ne.f32.partialorder %v153, %v153
    %vm178 = vcmp.ne.f32.partialorder %v156, %v156
    %vm179 = vcmp.ne.f32.partialorder %v159, %v159
    %vm180 = vcmp.ne.f32.partialorder %v162, %v162
    %vm181 = vcmp.ne.f32.partialorder %v165, %v165
    %vm182 = vmxor %vm166, 1
    %vm183 = vmxor %vm167, 1
    %vm184 = vmxor %vm168, 1
    %vm185 = vmxor %vm169, 1
    %vm186 = vmxor %vm170, 1
    %vm187 = vmxor %vm171, 1
    %vm188 = vmxor %vm172, 1
    %vm189 = vmxor %vm173, 1
    %vm190 = vmxor %vm174, 1
    %vm191 = vmxor %vm175, 1
    %vm192 = vmxor %vm176, 1
    %vm193 = vmxor %vm177, 1
    %vm194 = vmxor %vm178, 1
    %vm195 = vmxor %vm179, 1
    %vm196 = vmxor %vm180, 1
    %vm197 = vmxor %vm181, 1
    %s198 = sadd.s32 0, 0
    %s199 = smul.u32 %s198, 128
    %v200 = vlaneseq
    %v201 = vshrl.u32 %v200, 7
    %v202 = vadd.s32 %v201, 8
    %v203 = vadd.s32 %v201, 16
    %v204 = vadd.s32 %v201, 24
    %v205 = vadd.s32 %v201, 32
    %v206 = vadd.s32 %v201, 40
    %v207 = vadd.s32 %v201, 48
    %v208 = vadd.s32 %v201, 56
    %v209 = vadd.s32 %v201, 64
    %v210 = vadd.s32 %v201, 72
    %v211 = vadd.s32 %v201, 80
    %v212 = vadd.s32 %v201, 88
    %v213 = vadd.s32 %v201, 96
    %v214 = vadd.s32 %v201, 104
    %v215 = vadd.s32 %v201, 112
    %v216 = vadd.s32 %v201, 120
    %v217 = vstv %s199
    %v218 = vadd.s32 %v201, %v217
    %v219 = vadd.s32 %v202, %v217
    %v220 = vadd.s32 %v203, %v217
    %v221 = vadd.s32 %v204, %v217
    %v222 = vadd.s32 %v205, %v217
    %v223 = vadd.s32 %v206, %v217
    %v224 = vadd.s32 %v207, %v217
    %v225 = vadd.s32 %v208, %v217
    %v226 = vadd.s32 %v209, %v217
    %v227 = vadd.s32 %v210, %v217
    %v228 = vadd.s32 %v211, %v217
    %v229 = vadd.s32 %v212, %v217
    %v230 = vadd.s32 %v213, %v217
    %v231 = vadd.s32 %v214, %v217
    %v232 = vadd.s32 %v215, %v217
    %v233 = vadd.s32 %v216, %v217
    %vm234 = vcmp.lt.s32.totalorder %v218, 128
    %vm235 = vcmp.lt.s32.totalorder %v219, 128
    %vm236 = vcmp.lt.s32.totalorder %v220, 128
    %vm237 = vcmp.lt.s32.totalorder %v221, 128
    %vm238 = vcmp.lt.s32.totalorder %v222, 128
    %vm239 = vcmp.lt.s32.totalorder %v223, 128
    %vm240 = vcmp.lt.s32.totalorder %v224, 128
    %vm241 = vcmp.lt.s32.totalorder %v225, 128
    %vm242 = vcmp.lt.s32.totalorder %v226, 128
    %vm243 = vcmp.lt.s32.totalorder %v227, 128
    %vm244 = vcmp.lt.s32.totalorder %v228, 128
    %vm245 = vcmp.lt.s32.totalorder %v229, 128
    %vm246 = vcmp.lt.s32.totalorder %v230, 128
    %vm247 = vcmp.lt.s32.totalorder %v231, 128
    %vm248 = vcmp.lt.s32.totalorder %v232, 128
    %vm249 = vcmp.lt.s32.totalorder %v233, 128
    %vm250 = vmand %vm182, %vm234
    %vm251 = vmand %vm183, %vm235
    %vm252 = vmand %vm184, %vm236
    %vm253 = vmand %vm185, %vm237
    %vm254 = vmand %vm186, %vm238
    %vm255 = vmand %vm187, %vm239
    %vm256 = vmand %vm188, %vm240
    %vm257 = vmand %vm189, %vm241
    %vm258 = vmand %vm190, %vm242
    %vm259 = vmand %vm191, %vm243
    %vm260 = vmand %vm192, %vm244
    %vm261 = vmand %vm193, %vm245
    %vm262 = vmand %vm194, %vm246
    %vm263 = vmand %vm195, %vm247
    %vm264 = vmand %vm196, %vm248
    %vm265 = vmand %vm197, %vm249
    %v266 = vsel %vm117, %v85, -inf
    %267 = vmax.xlane.f32.xlu0 %v266
    %v268 = vpop.xlane.xlu0 %267
    %v269 = vsel %vm117, %v86, -inf
    %270 = vmax.xlane.f32.xlu0 %v269
    %v271 = vpop.xlane.xlu0 %270
    %v272 = vsel %vm117, %v87, -inf
    %273 = vmax.xlane.f32.xlu0 %v272
    %v274 = vpop.xlane.xlu0 %273
    %v275 = vsel %vm117, %v88, -inf
    %276 = vmax.xlane.f32.xlu0 %v275
    %v277 = vpop.xlane.xlu0 %276
    %v278 = vsel %vm117, %v89, -inf
    %279 = vmax.xlane.f32.xlu0 %v278
    %v280 = vpop.xlane.xlu0 %279
    %v281 = vsel %vm117, %v90, -inf
    %282 = vmax.xlane.f32.xlu0 %v281
    %v283 = vpop.xlane.xlu0 %282
    %v284 = vsel %vm117, %v91, -inf
    %285 = vmax.xlane.f32.xlu0 %v284
    %v286 = vpop.xlane.xlu0 %285
    %v287 = vsel %vm117, %v92, -inf
    %288 = vmax.xlane.f32.xlu0 %v287
    %v289 = vpop.xlane.xlu0 %288
    %v290 = vsel %vm117, %v93, -inf
    %291 = vmax.xlane.f32.xlu0 %v290
    %v292 = vpop.xlane.xlu0 %291
    %v293 = vsel %vm117, %v94, -inf
    %294 = vmax.xlane.f32.xlu0 %v293
    %v295 = vpop.xlane.xlu0 %294
    %v296 = vsel %vm117, %v95, -inf
    %297 = vmax.xlane.f32.xlu0 %v296
    %v298 = vpop.xlane.xlu0 %297
    %v299 = vsel %vm117, %v96, -inf
    %300 = vmax.xlane.f32.xlu0 %v299
    %v301 = vpop.xlane.xlu0 %300
    %v302 = vsel %vm117, %v97, -inf
    %303 = vmax.xlane.f32.xlu0 %v302
    %v304 = vpop.xlane.xlu0 %303
    %v305 = vsel %vm117, %v98, -inf
    %306 = vmax.xlane.f32.xlu0 %v305
    %v307 = vpop.xlane.xlu0 %306
    %v308 = vsel %vm117, %v99, -inf
    %309 = vmax.xlane.f32.xlu0 %v308
    %v310 = vpop.xlane.xlu0 %309
    %v311 = vsel %vm117, %v100, -inf
    %312 = vmax.xlane.f32.xlu0 %v311
    %v313 = vpop.xlane.xlu0 %312
    %v314 = vsub.f32 %v85, %v268
    %v315 = vsub.f32 %v86, %v271
    %v316 = vsub.f32 %v87, %v274
    %v317 = vsub.f32 %v88, %v277
    %v318 = vsub.f32 %v89, %v280
    %v319 = vsub.f32 %v90, %v283
    %v320 = vsub.f32 %v91, %v286
    %v321 = vsub.f32 %v92, %v289
    %v322 = vsub.f32 %v93, %v292
    %v323 = vsub.f32 %v94, %v295
    %v324 = vsub.f32 %v95, %v298
    %v325 = vsub.f32 %v96, %v301
    %v326 = vsub.f32 %v97, %v304
    %v327 = vsub.f32 %v98, %v307
    %v328 = vsub.f32 %v99, %v310
    %v329 = vsub.f32 %v100, %v313
    %v330 = vmul.f32 %v314, 1.442695
    %v331 = vpow.pop %v330
    %v332 = vmul.f32 %v315, 1.442695
    %v333 = vpow.pop %v332
    %v334 = vmul.f32 %v316, 1.442695
    %v335 = vpow.pop %v334
    %v336 = vmul.f32 %v317, 1.442695
    %v337 = vpow.pop %v336
    %v338 = vmul.f32 %v318, 1.442695
    %v339 = vpow.pop %v338
    %v340 = vmul.f32 %v319, 1.442695
    %v341 = vpow.pop %v340
    %v342 = vmul.f32 %v320, 1.442695
    %v343 = vpow.pop %v342
    %v344 = vmul.f32 %v321, 1.442695
    %v345 = vpow.pop %v344
    %v346 = vmul.f32 %v322, 1.442695
    %v347 = vpow.pop %v346
    %v348 = vmul.f32 %v323, 1.442695
    %v349 = vpow.pop %v348
    %v350 = vmul.f32 %v324, 1.442695
    %v351 = vpow.pop %v350
    %v352 = vmul.f32 %v325, 1.442695
    %v353 = vpow.pop %v352
    %v354 = vmul.f32 %v326, 1.442695
    %v355 = vpow.pop %v354
    %v356 = vmul.f32 %v327, 1.442695
    %v357 = vpow.pop %v356
    %v358 = vmul.f32 %v328, 1.442695
    %v359 = vpow.pop %v358
    %v360 = vmul.f32 %v329, 1.442695
    %v361 = vpow.pop %v360
    %v362 = vsel %vm117, %v331, 0.0
    %363 = vadd.xlane.f32.xlu0 %v362
    %v364 = vpop.xlane.xlu0 %363
    %v365 = vsel %vm117, %v333, 0.0
    %366 = vadd.xlane.f32.xlu0 %v365
    %v367 = vpop.xlane.xlu0 %366
    %v368 = vsel %vm117, %v335, 0.0
    %369 = vadd.xlane.f32.xlu0 %v368
    %v370 = vpop.xlane.xlu0 %369
    %v371 = vsel %vm117, %v337, 0.0
    %372 = vadd.xlane.f32.xlu0 %v371
    %v373 = vpop.xlane.xlu0 %372
    %v374 = vsel %vm117, %v339, 0.0
    %375 = vadd.xlane.f32.xlu0 %v374
    %v376 = vpop.xlane.xlu0 %375
    %v377 = vsel %vm117, %v341, 0.0
    %378 = vadd.xlane.f32.xlu0 %v377
    %v379 = vpop.xlane.xlu0 %378
    %v380 = vsel %vm117, %v343, 0.0
    %381 = vadd.xlane.f32.xlu0 %v380
    %v382 = vpop.xlane.xlu0 %381
    %v383 = vsel %vm117, %v345, 0.0
    %384 = vadd.xlane.f32.xlu0 %v383
    %v385 = vpop.xlane.xlu0 %384
    %v386 = vsel %vm117, %v347, 0.0
    %387 = vadd.xlane.f32.xlu0 %v386
    %v388 = vpop.xlane.xlu0 %387
    %v389 = vsel %vm117, %v349, 0.0
    %390 = vadd.xlane.f32.xlu0 %v389
    %v391 = vpop.xlane.xlu0 %390
    %v392 = vsel %vm117, %v351, 0.0
    %393 = vadd.xlane.f32.xlu0 %v392
    %v394 = vpop.xlane.xlu0 %393
    %v395 = vsel %vm117, %v353, 0.0
    %396 = vadd.xlane.f32.xlu0 %v395
    %v397 = vpop.xlane.xlu0 %396
    %v398 = vsel %vm117, %v355, 0.0
    %399 = vadd.xlane.f32.xlu0 %v398
    %v400 = vpop.xlane.xlu0 %399
    %v401 = vsel %vm117, %v357, 0.0
    %402 = vadd.xlane.f32.xlu0 %v401
    %v403 = vpop.xlane.xlu0 %402
    %v404 = vsel %vm117, %v359, 0.0
    %405 = vadd.xlane.f32.xlu0 %v404
    %v406 = vpop.xlane.xlu0 %405
    %v407 = vsel %vm117, %v361, 0.0
    %408 = vadd.xlane.f32.xlu0 %v407
    %v409 = vpop.xlane.xlu0 %408
    %v410 = vlog2.pop %v364
    %v411 = vmul.f32 %v410, 0.6931472
    %v412 = vlog2.pop %v367
    %v413 = vmul.f32 %v412, 0.6931472
    %v414 = vlog2.pop %v370
    %v415 = vmul.f32 %v414, 0.6931472
    %v416 = vlog2.pop %v373
    %v417 = vmul.f32 %v416, 0.6931472
    %v418 = vlog2.pop %v376
    %v419 = vmul.f32 %v418, 0.6931472
    %v420 = vlog2.pop %v379
    %v421 = vmul.f32 %v420, 0.6931472
    %v422 = vlog2.pop %v382
    %v423 = vmul.f32 %v422, 0.6931472
    %v424 = vlog2.pop %v385
    %v425 = vmul.f32 %v424, 0.6931472
    %v426 = vlog2.pop %v388
    %v427 = vmul.f32 %v426, 0.6931472
    %v428 = vlog2.pop %v391
    %v429 = vmul.f32 %v428, 0.6931472
    %v430 = vlog2.pop %v394
    %v431 = vmul.f32 %v430, 0.6931472
    %v432 = vlog2.pop %v397
    %v433 = vmul.f32 %v432, 0.6931472
    %v434 = vlog2.pop %v400
    %v435 = vmul.f32 %v434, 0.6931472
    %v436 = vlog2.pop %v403
    %v437 = vmul.f32 %v436, 0.6931472
    %v438 = vlog2.pop %v406
    %v439 = vmul.f32 %v438, 0.6931472
    %v440 = vlog2.pop %v409
    %v441 = vmul.f32 %v440, 0.6931472
    %v442 = vadd.f32 %v411, %v268
    %v443 = vadd.f32 %v413, %v271
    %v444 = vadd.f32 %v415, %v274
    %v445 = vadd.f32 %v417, %v277
    %v446 = vadd.f32 %v419, %v280
    %v447 = vadd.f32 %v421, %v283
    %v448 = vadd.f32 %v423, %v286
    %v449 = vadd.f32 %v425, %v289
    %v450 = vadd.f32 %v427, %v292
    %v451 = vadd.f32 %v429, %v295
    %v452 = vadd.f32 %v431, %v298
    %v453 = vadd.f32 %v433, %v301
    %v454 = vadd.f32 %v435, %v304
    %v455 = vadd.f32 %v437, %v307
    %v456 = vadd.f32 %v439, %v310
    %v457 = vadd.f32 %v441, %v313
    %v458 = vsub.f32 %v442, %v85
    %v459 = vsub.f32 %v443, %v86
    %v460 = vsub.f32 %v444, %v87
    %v461 = vsub.f32 %v445, %v88
    %v462 = vsub.f32 %v446, %v89
    %v463 = vsub.f32 %v447, %v90
    %v464 = vsub.f32 %v448, %v91
    %v465 = vsub.f32 %v449, %v92
    %v466 = vsub.f32 %v450, %v93
    %v467 = vsub.f32 %v451, %v94
    %v468 = vsub.f32 %v452, %v95
    %v469 = vsub.f32 %v453, %v96
    %v470 = vsub.f32 %v454, %v97
    %v471 = vsub.f32 %v455, %v98
    %v472 = vsub.f32 %v456, %v99
    %v473 = vsub.f32 %v457, %v100
    %v474 = vmul.f32 %v101, %v458
    %v475 = vmul.f32 %v102, %v459
    %v476 = vmul.f32 %v103, %v460
    %v477 = vmul.f32 %v104, %v461
    %v478 = vmul.f32 %v105, %v462
    %v479 = vmul.f32 %v106, %v463
    %v480 = vmul.f32 %v107, %v464
    %v481 = vmul.f32 %v108, %v465
    %v482 = vmul.f32 %v109, %v466
    %v483 = vmul.f32 %v110, %v467
    %v484 = vmul.f32 %v111, %v468
    %v485 = vmul.f32 %v112, %v469
    %v486 = vmul.f32 %v113, %v470
    %v487 = vmul.f32 %v114, %v471
    %v488 = vmul.f32 %v115, %v472
    %v489 = vmul.f32 %v116, %v473
    %v490 = vsel %vm250, 1, 0
    %v491 = vsel %vm251, 1, 0
    %v492 = vsel %vm252, 1, 0
    %v493 = vsel %vm253, 1, 0
    %v494 = vsel %vm254, 1, 0
    %v495 = vsel %vm255, 1, 0
    %v496 = vsel %vm256, 1, 0
    %v497 = vsel %vm257, 1, 0
    %v498 = vsel %vm258, 1, 0
    %v499 = vsel %vm259, 1, 0
    %v500 = vsel %vm260, 1, 0
    %v501 = vsel %vm261, 1, 0
    %v502 = vsel %vm262, 1, 0
    %v503 = vsel %vm263, 1, 0
    %v504 = vsel %vm264, 1, 0
    %v505 = vsel %vm265, 1, 0
    %vm506 = vcmp.eq.s32.totalorder %v490, 1
    %vm507 = vcmp.eq.s32.totalorder %v491, 1
    %vm508 = vcmp.eq.s32.totalorder %v492, 1
    %vm509 = vcmp.eq.s32.totalorder %v493, 1
    %vm510 = vcmp.eq.s32.totalorder %v494, 1
    %vm511 = vcmp.eq.s32.totalorder %v495, 1
    %vm512 = vcmp.eq.s32.totalorder %v496, 1
    %vm513 = vcmp.eq.s32.totalorder %v497, 1
    %vm514 = vcmp.eq.s32.totalorder %v498, 1
    %vm515 = vcmp.eq.s32.totalorder %v499, 1
    %vm516 = vcmp.eq.s32.totalorder %v500, 1
    %vm517 = vcmp.eq.s32.totalorder %v501, 1
    %vm518 = vcmp.eq.s32.totalorder %v502, 1
    %vm519 = vcmp.eq.s32.totalorder %v503, 1
    %vm520 = vcmp.eq.s32.totalorder %v504, 1
    %vm521 = vcmp.eq.s32.totalorder %v505, 1
    %v522 = vsel %vm506, %v474, 0.0
    %v523 = vsel %vm507, %v475, 0.0
    %v524 = vsel %vm508, %v476, 0.0
    %v525 = vsel %vm509, %v477, 0.0
    %v526 = vsel %vm510, %v478, 0.0
    %v527 = vsel %vm511, %v479, 0.0
    %v528 = vsel %vm512, %v480, 0.0
    %v529 = vsel %vm513, %v481, 0.0
    %v530 = vsel %vm514, %v482, 0.0
    %v531 = vsel %vm515, %v483, 0.0
    %v532 = vsel %vm516, %v484, 0.0
    %v533 = vsel %vm517, %v485, 0.0
    %v534 = vsel %vm518, %v486, 0.0
    %v535 = vsel %vm519, %v487, 0.0
    %v536 = vsel %vm520, %v488, 0.0
    %v537 = vsel %vm521, %v489, 0.0
    %v538 = vsel %vm250, 1.0, 0.0
    %v539 = vsel %vm251, 1.0, 0.0
    %v540 = vsel %vm252, 1.0, 0.0
    %v541 = vsel %vm253, 1.0, 0.0
    %v542 = vsel %vm254, 1.0, 0.0
    %v543 = vsel %vm255, 1.0, 0.0
    %v544 = vsel %vm256, 1.0, 0.0
    %v545 = vsel %vm257, 1.0, 0.0
    %v546 = vsel %vm258, 1.0, 0.0
    %v547 = vsel %vm259, 1.0, 0.0
    %v548 = vsel %vm260, 1.0, 0.0
    %v549 = vsel %vm261, 1.0, 0.0
    %v550 = vsel %vm262, 1.0, 0.0
    %v551 = vsel %vm263, 1.0, 0.0
    %v552 = vsel %vm264, 1.0, 0.0
    %v553 = vsel %vm265, 1.0, 0.0
    %v554 = vsel %vm117, %v522, 0.0
    %v555 = vsel %vm117, %v523, 0.0
    %v556 = vadd.f32 %v554, %v555
    %v557 = vsel %vm117, %v524, 0.0
    %v558 = vadd.f32 %v556, %v557
    %v559 = vsel %vm117, %v525, 0.0
    %v560 = vadd.f32 %v558, %v559
    %v561 = vsel %vm117, %v526, 0.0
    %v562 = vadd.f32 %v560, %v561
    %v563 = vsel %vm117, %v527, 0.0
    %v564 = vadd.f32 %v562, %v563
    %v565 = vsel %vm117, %v528, 0.0
    %v566 = vadd.f32 %v564, %v565
    %v567 = vsel %vm117, %v529, 0.0
    %v568 = vadd.f32 %v566, %v567
    %v569 = vsel %vm117, %v530, 0.0
    %v570 = vadd.f32 %v568, %v569
    %v571 = vsel %vm117, %v531, 0.0
    %v572 = vadd.f32 %v570, %v571
    %v573 = vsel %vm117, %v532, 0.0
    %v574 = vadd.f32 %v572, %v573
    %v575 = vsel %vm117, %v533, 0.0
    %v576 = vadd.f32 %v574, %v575
    %v577 = vsel %vm117, %v534, 0.0
    %v578 = vadd.f32 %v576, %v577
    %v579 = vsel %vm117, %v535, 0.0
    %v580 = vadd.f32 %v578, %v579
    %v581 = vsel %vm117, %v536, 0.0
    %v582 = vadd.f32 %v580, %v581
    %v583 = vsel %vm117, %v537, 0.0
    %v584 = vadd.f32 %v582, %v583
    %v585 = vadd.f32 %v538, %v539
    %v586 = vadd.f32 %v585, %v540
    %v587 = vadd.f32 %v586, %v541
    %v588 = vadd.f32 %v587, %v542
    %v589 = vadd.f32 %v588, %v543
    %v590 = vadd.f32 %v589, %v544
    %v591 = vadd.f32 %v590, %v545
    %v592 = vadd.f32 %v591, %v546
    %v593 = vadd.f32 %v592, %v547
    %v594 = vadd.f32 %v593, %v548
    %v595 = vadd.f32 %v594, %v549
    %v596 = vadd.f32 %v595, %v550
    %v597 = vadd.f32 %v596, %v551
    %v598 = vadd.f32 %v597, %v552
    %v599 = vadd.f32 %v598, %v553
    %v600 = vld [vmem:[#allocation2] sm:$0xff]
    %v601 = vadd.f32 %v600, %v584
    %602 = vst.msk [vmem:[#allocation2] sm:$0xff] %vm117, %v601
    %v603 = vld [vmem:[#allocation4] sm:$0xff]
    %v604 = vadd.f32 %v603, %v599
    %vm605 = vcmask 7168
    %606 = vst.msk [vmem:[#allocation4] sm:$0xff] %vm605, %v604
    // Predicated region
    $region14: #{tpu_custom_call.1} parent=1 // pred_check
      _
    $region15: #{tpu_custom_call.1} parent=1 // pred_check_branch
      %608 = sbr.rel (0) target = $region17
    $region16: #{tpu_custom_call.1} parent=1 // pred_region
      %610 = vsyncadd [#allocation3], 0
      %s612 = sshll.u32 [#allocation2], 4
      %s613 = int_to_ptr.vmem [resolvable:$true] %s612
      %s614 = sshll.u32 %s2, 4
      %s615 = int_to_ptr.hbm [resolvable:$true] %s614
      %617 = dma.vmem_to_hbm [thread:$0]  %s613, 128, %s615, [#allocation3]
    $region17: #{tpu_custom_call.1} parent=1 // pred_fallthru
      _
    // Predicated region
    $region18: #{tpu_custom_call.1} parent=1 // pred_check
      _
    $region19: #{tpu_custom_call.1} parent=1 // pred_check_branch
      %619 = sbr.rel (0) target = $region21
    $region20: #{tpu_custom_call.1} parent=1 // pred_region
      %621 = vsyncadd [#allocation5], 0
      %s623 = sshll.u32 [#allocation4], 4
      %s624 = int_to_ptr.vmem [resolvable:$true] %s623
      %s625 = sshll.u32 %s3, 4
      %s626 = int_to_ptr.hbm [resolvable:$true] %s625
      %628 = dma.vmem_to_hbm [thread:$0]  %s624, 128, %s626, [#allocation5]
    $region21: #{tpu_custom_call.1} parent=1 // pred_fallthru
      _
    // Predicated region
    $region22: #{tpu_custom_call.1} parent=1 // pred_check
      _
    $region23: #{tpu_custom_call.1} parent=1 // pred_check_branch
      %630 = sbr.rel (0) target = $region25
    $region24: #{tpu_custom_call.1} parent=1 // pred_region
      %632 = dma.done [#allocation3], 128
    $region25: #{tpu_custom_call.1} parent=1 // pred_fallthru
      _
    // Predicated region
    $region26: #{tpu_custom_call.1} parent=1 // pred_check
      _
    $region27: #{tpu_custom_call.1} parent=1 // pred_check_branch
      %634 = sbr.rel (0) target = $region29
    $region28: #{tpu_custom_call.1} parent=1 // pred_region
      %636 = dma.done [#allocation5], 128
    $region29: #{tpu_custom_call.1} parent=1 // pred_fallthru
      _
    %637 = vsyncpa [#allocation3], 1
    %638 = vsyncpa [#allocation5], 1

</llo_original>
